<compile_context>
chip_gen: v7x
topology: tpu7x:2x2x1
jax: 0.10.0
libtpu: 0.0.40
codegen_flags: <defaults>
</compile_context>

<pallas_src>
import math
import functools

import jax
import jax.numpy as jnp
from jax.experimental import pallas as pl
from jax.experimental.pallas import tpu as pltpu


def _edgeformer_self_attention_kernel(
    x_ref,        # (S, H)    hidden_states for one batch element (b squeezed)
    wqkv_ref,     # (H, 3H)   fused [Wq*scale | Wk | Wv], bf16
    bqkv_ref,     # (1, 3H)   fused [bq*scale | bk | bv], f32
    ctx_ref,      # (S, H)    context_layer (lane-dense)
    k_ref,        # (S, H)    key projection (lane-dense)
    v_ref,        # (S, H)    value projection (lane-dense)
    *, seq, num_heads, head_dim,
):
    S, NH, HD = seq, num_heads, head_dim
    H = NH * HD

    # One fused QKV projection: a single (S,H)x(H,3H) MXU pass, f32 accumulate.
    x = x_ref[...].astype(jnp.bfloat16)
    qkv = jnp.dot(x, wqkv_ref[...], preferred_element_type=jnp.float32)
    qkv = qkv + bqkv_ref[...]                                    # (S, 3H) f32

    q = qkv[:, :H]              # 1/sqrt(HD) already folded into Wq / bq
    k = qkv[:, H:2 * H]
    v = qkv[:, 2 * H:]

    # past_key_value writeback: one full lane-dense (S, H) slab store each,
    # straight from the f32 projection accumulator.
    k_ref[...] = k.astype(k_ref.dtype)
    v_ref[...] = v.astype(v_ref.dtype)

    # Split to heads only for the attention einsums (bf16 MXU operands).
    def heads(t):               # (S, H) -> (NH, S, HD)
        return t.astype(jnp.bfloat16).reshape(S, NH, HD).transpose(1, 0, 2)

    q_h, k_h, v_h = heads(q), heads(k), heads(v)
    scores = jnp.einsum('hqd,hkd->hqk', q_h, k_h,
                        preferred_element_type=jnp.float32)      # (NH, S, S)

    # Softmax kept entirely in f32 (no bf16 VPU/EUP on v5e); denom on the EUP.
    scores = scores - jnp.max(scores, axis=-1, keepdims=True)
    p = jnp.exp(scores)
    p = p * pl.reciprocal(jnp.sum(p, axis=-1, keepdims=True), approx=True)
    # attention_probs dropout: no-op in eval mode.

    ctx = jnp.einsum('hqk,hkd->hqd', p.astype(jnp.bfloat16), v_h,
                     preferred_element_type=jnp.float32)         # (NH, S, HD)
    # Lane-dense output store: merge heads back onto the lane dim.
    ctx_ref[...] = ctx.transpose(1, 0, 2).reshape(S, H).astype(ctx_ref.dtype)


def edgeformer_self_attention(hidden_states, params, *, num_heads):
    """EdgeFormerSelfAttention forward (standard attention, eval mode).

    Returns (context_layer, (key_layer, value_layer)), matching the PyTorch
    module with default optional arguments.
    """
    B, S, H = hidden_states.shape
    HD = H // num_heads
    dt = hidden_states.dtype
    scale = 1.0 / math.sqrt(HD)

    # Param prep (wrapper-side, one-time constant work):
    #  - fold softmax scale into the query weights/bias,
    #  - fuse Wq|Wk|Wv into a single (H, 3H) bf16 slab.
    # Linear weights here are stored transposed vs torch.nn.Linear, i.e. (in, out).
    wqkv = jnp.concatenate(
        [params["wq"] * scale, params["wk"], params["wv"]], axis=1
    ).astype(jnp.bfloat16)                                        # (H, 3H)
    bqkv = jnp.concatenate(
        [params["bq"] * scale, params["bk"], params["bv"]], axis=0
    ).reshape(1, 3 * H).astype(jnp.float32)                       # (1, 3H)

    kernel = functools.partial(
        _edgeformer_self_attention_kernel,
        seq=S, num_heads=num_heads, head_dim=HD)

    out_shapes = (
        jax.ShapeDtypeStruct((B, S, H), dt),   # context_layer (lane-dense)
        jax.ShapeDtypeStruct((B, S, H), dt),   # key projection
        jax.ShapeDtypeStruct((B, S, H), dt),   # value projection
    )

    x_spec = pl.BlockSpec((None, S, H), lambda b: (b, 0, 0))      # b squeezed
    w_spec = pl.BlockSpec((H, 3 * H), lambda b: (0, 0))           # constant block
    b_spec = pl.BlockSpec((1, 3 * H), lambda b: (0, 0))
    o_spec = pl.BlockSpec((None, S, H), lambda b: (b, 0, 0))

    grid_spec = pltpu.PrefetchScalarGridSpec(
        num_scalar_prefetch=0,
        grid=(B,),                       # parallel batch axis (v7x: 2 TCs)
        in_specs=[x_spec, w_spec, b_spec],
        out_specs=[o_spec, o_spec, o_spec],
    )

    ctx, k_out, v_out = pl.pallas_call(
        kernel,
        out_shape=out_shapes,
        grid_spec=grid_spec,
        compiler_params=pltpu.CompilerParams(
            dimension_semantics=("parallel",),
        ),
    )(hidden_states, wqkv, bqkv)

    # Layout plumbing back to the PyTorch shapes happens outside the kernel.
    key_layer = k_out.reshape(B, S, num_heads, HD).transpose(0, 2, 1, 3)
    value_layer = v_out.reshape(B, S, num_heads, HD).transpose(0, 2, 1, 3)
    return ctx, (key_layer, value_layer)


def init_params(key, hidden_size):
    """Deterministic synthetic init (Linear weights stored (in, out))."""
    ks = jax.random.split(key, 6)
    scale = 0.02
    H = hidden_size
    return {
        "wq": scale * jax.random.normal(ks[0], (H, H), jnp.float32),
        "bq": scale * jax.random.normal(ks[1], (H,), jnp.float32),
        "wk": scale * jax.random.normal(ks[2], (H, H), jnp.float32),
        "bk": scale * jax.random.normal(ks[3], (H,), jnp.float32),
        "wv": scale * jax.random.normal(ks[4], (H, H), jnp.float32),
        "bv": scale * jax.random.normal(ks[5], (H,), jnp.float32),
    }


def _reference(hidden_states, params, num_heads):
    """Pure-JAX f32 reference matching the PyTorch forward (eval mode)."""
    B, S, H = hidden_states.shape
    hd = H // num_heads
    x = hidden_states.astype(jnp.float32)

    def proj(w, b):
        y = jnp.einsum('bsh,ho->bso', x, w) + b
        return y.reshape(B, S, num_heads, hd).transpose(0, 2, 1, 3)

    q = proj(params["wq"], params["bq"])
    k = proj(params["wk"], params["bk"])
    v = proj(params["wv"], params["bv"])
    scores = jnp.einsum('bhqd,bhkd->bhqk', q, k) / math.sqrt(hd)
    probs = jax.nn.softmax(scores, axis=-1)
    ctx = jnp.einsum('bhqk,bhkd->bhqd', probs, v)
    ctx = ctx.transpose(0, 2, 1, 3).reshape(B, S, H)
    return ctx, k, v


if __name__ == "__main__":
    # config: hidden_size=32, num_attention_heads=4, seq=8, batch=2
    B, S, H, NH = 2, 8, 32, 4
    key = jax.random.PRNGKey(0)
    k_x, k_p = jax.random.split(key)
    hidden_states = jax.random.normal(k_x, (B, S, H), jnp.float32)
    params = init_params(k_p, H)

    context_layer, (key_layer, value_layer) = edgeformer_self_attention(
        hidden_states, params, num_heads=NH)
    jax.block_until_ready(context_layer)
    jax.block_until_ready(key_layer)
    jax.block_until_ready(value_layer)

    ref_ctx, ref_k, ref_v = _reference(hidden_states, params, NH)
    # bf16 MXU operands + approx reciprocal -> ~1e-3-level deviations vs the
    # f32 reference, so the tolerance is loosened accordingly.
    assert jnp.allclose(context_layer, ref_ctx, atol=2e-2, rtol=2e-2), "context_layer mismatch"
    assert jnp.allclose(key_layer, ref_k, atol=2e-2, rtol=2e-2), "key_layer mismatch"
    assert jnp.allclose(value_layer, ref_v, atol=2e-2, rtol=2e-2), "value_layer mismatch"

    print("KERNEL_OK")
</pallas_src>

<mosaic_0001>
module attributes {stable_mosaic.version = 11 : i64} {
  func.func @_edgeformer_self_attention_kernel(%arg0: i32, %arg1: memref<1x8x32xf32, #tpu.memory_space<vmem>>, %arg2: memref<32x96xbf16, #tpu.memory_space<vmem>>, %arg3: memref<1x96xf32, #tpu.memory_space<vmem>>, %arg4: memref<1x8x32xf32, #tpu.memory_space<vmem>>, %arg5: memref<1x8x32xf32, #tpu.memory_space<vmem>>, %arg6: memref<1x8x32xf32, #tpu.memory_space<vmem>>) attributes {dimension_semantics = [#tpu.dimension_semantics<parallel>], iteration_bounds = array<i64: 2>, scalar_prefetch = 0 : i64, scratch_operands = 0 : i64, tpu.core_type = #tpu.core_type<tc>, window_params = [{transform_indices = @transform_0, window_bounds = array<i64: 1, 8, 32>}, {pipeline_mode = #tpu.pipeline_mode<synchronous>, transform_indices = @transform_1, window_bounds = array<i64: 32, 96>}, {pipeline_mode = #tpu.pipeline_mode<synchronous>, transform_indices = @transform_2, window_bounds = array<i64: 1, 96>}, {transform_indices = @transform_3, window_bounds = array<i64: 1, 8, 32>}, {transform_indices = @transform_4, window_bounds = array<i64: 1, 8, 32>}, {transform_indices = @transform_5, window_bounds = array<i64: 1, 8, 32>}]} {
    %c0 = arith.constant 0 : index
    %c0_0 = arith.constant 0 : index
    %c0_1 = arith.constant 0 : index
    %0 = vector.load %arg1[%c0, %c0_0, %c0_1] : memref<1x8x32xf32, #tpu.memory_space<vmem>>, vector<1x8x32xf32>
    %1 = vector.shape_cast %0 : vector<1x8x32xf32> to vector<8x32xf32>
    %2 = arith.truncf %1 : vector<8x32xf32> to vector<8x32xbf16>
    %c0_2 = arith.constant 0 : index
    %c0_3 = arith.constant 0 : index
    %3 = vector.load %arg2[%c0_2, %c0_3] : memref<32x96xbf16, #tpu.memory_space<vmem>>, vector<32x96xbf16>
    %cst = arith.constant dense<0.000000e+00> : vector<8x96xf32>
    %4 = tpu.matmul %2, %3, %cst {dimension_numbers = #tpu.dot_dimension_numbers<[1], [0], [0], [1], [0, 0, 1, 1], [], []>} : vector<8x32xbf16>, vector<32x96xbf16>, vector<8x96xf32> -> vector<8x96xf32>
    %c0_4 = arith.constant 0 : index
    %c0_5 = arith.constant 0 : index
    %5 = vector.load %arg3[%c0_4, %c0_5] : memref<1x96xf32, #tpu.memory_space<vmem>>, vector<1x96xf32>
    %6 = vector.broadcast %5 : vector<1x96xf32> to vector<8x96xf32>
    %7 = arith.addf %4, %6 : vector<8x96xf32>
    %8 = vector.extract_strided_slice %7 {offsets = [0, 0], sizes = [8, 32], strides = [1, 1]} : vector<8x96xf32> to vector<8x32xf32>
    %9 = vector.extract_strided_slice %7 {offsets = [0, 32], sizes = [8, 32], strides = [1, 1]} : vector<8x96xf32> to vector<8x32xf32>
    %10 = vector.extract_strided_slice %7 {offsets = [0, 64], sizes = [8, 32], strides = [1, 1]} : vector<8x96xf32> to vector<8x32xf32>
    %c0_6 = arith.constant 0 : index
    %c0_7 = arith.constant 0 : index
    %c0_8 = arith.constant 0 : index
    %11 = vector.load %arg5[%c0_6, %c0_7, %c0_8] : memref<1x8x32xf32, #tpu.memory_space<vmem>>, vector<1x8x32xf32>
    %12 = vector.shape_cast %11 : vector<1x8x32xf32> to vector<8x32xf32>
    %13 = vector.shape_cast %9 : vector<8x32xf32> to vector<1x8x32xf32>
    tpu.vector_store %arg5[%c0_6, %c0_7, %c0_8], %13 {strides = array<i32>} : memref<1x8x32xf32, #tpu.memory_space<vmem>>, vector<1x8x32xf32>,
    %c0_9 = arith.constant 0 : index
    %c0_10 = arith.constant 0 : index
    %c0_11 = arith.constant 0 : index
    %14 = vector.load %arg6[%c0_9, %c0_10, %c0_11] : memref<1x8x32xf32, #tpu.memory_space<vmem>>, vector<1x8x32xf32>
    %15 = vector.shape_cast %14 : vector<1x8x32xf32> to vector<8x32xf32>
    %16 = vector.shape_cast %10 : vector<8x32xf32> to vector<1x8x32xf32>
    tpu.vector_store %arg6[%c0_9, %c0_10, %c0_11], %16 {strides = array<i32>} : memref<1x8x32xf32, #tpu.memory_space<vmem>>, vector<1x8x32xf32>,
    %17 = arith.truncf %8 : vector<8x32xf32> to vector<8x32xbf16>
    %18 = vector.shape_cast %17 : vector<8x32xbf16> to vector<8x4x8xbf16>
    %19 = tpu.transpose %18, [1, 0, 2] : vector<8x4x8xbf16> -> vector<4x8x8xbf16>
    %20 = arith.truncf %9 : vector<8x32xf32> to vector<8x32xbf16>
    %21 = vector.shape_cast %20 : vector<8x32xbf16> to vector<8x4x8xbf16>
    %22 = tpu.transpose %21, [1, 0, 2] : vector<8x4x8xbf16> -> vector<4x8x8xbf16>
    %23 = arith.truncf %10 : vector<8x32xf32> to vector<8x32xbf16>
    %24 = vector.shape_cast %23 : vector<8x32xbf16> to vector<8x4x8xbf16>
    %25 = tpu.transpose %24, [1, 0, 2] : vector<8x4x8xbf16> -> vector<4x8x8xbf16>
    "tpu.trace_start"() <{level = 10 : i32, message = "hqd,hkd->hqk"}> : () -> ()
    %cst_12 = arith.constant dense<0.000000e+00> : vector<4x8x8xf32>
    %26 = tpu.matmul %19, %22, %cst_12 {dimension_numbers = #tpu.dot_dimension_numbers<[2], [2], [1], [1], [0, 0, 0, 1, 1, 1], [0], [0]>} : vector<4x8x8xbf16>, vector<4x8x8xbf16>, vector<4x8x8xf32> -> vector<4x8x8xf32>
    "tpu.trace_stop"() : () -> ()
    %cst_13 = arith.constant dense<0xFF800000> : vector<4x8xf32>
    %27 = vector.multi_reduction <maximumf>, %26, %cst_13 [2] : vector<4x8x8xf32> to vector<4x8xf32>
    %28 = vector.shape_cast %27 : vector<4x8xf32> to vector<4x8x1xf32>
    %29 = vector.broadcast %28 : vector<4x8x1xf32> to vector<4x8x8xf32>
    %30 = arith.subf %26, %29 : vector<4x8x8xf32>
    %31 = math.exp %30 : vector<4x8x8xf32>
    %cst_14 = arith.constant dense<0.000000e+00> : vector<4x8xf32>
    %32 = vector.multi_reduction <add>, %31, %cst_14 [2] : vector<4x8x8xf32> to vector<4x8xf32>
    %33 = vector.shape_cast %32 : vector<4x8xf32> to vector<4x8x1xf32>
    %34 = tpu.reciprocal %33 {approx = true} : vector<4x8x1xf32> -> vector<4x8x1xf32>
    %35 = vector.broadcast %34 : vector<4x8x1xf32> to vector<4x8x8xf32>
    %36 = arith.mulf %31, %35 : vector<4x8x8xf32>
    %37 = arith.truncf %36 : vector<4x8x8xf32> to vector<4x8x8xbf16>
    "tpu.trace_start"() <{level = 10 : i32, message = "hqk,hkd->hqd"}> : () -> ()
    %cst_15 = arith.constant dense<0.000000e+00> : vector<4x8x8xf32>
    %38 = tpu.matmul %37, %25, %cst_15 {dimension_numbers = #tpu.dot_dimension_numbers<[2], [1], [1], [2], [0, 0, 0, 1, 1, 2], [0], [0]>} : vector<4x8x8xbf16>, vector<4x8x8xbf16>, vector<4x8x8xf32> -> vector<4x8x8xf32>
    "tpu.trace_stop"() : () -> ()
    %39 = tpu.transpose %38, [1, 0, 2] : vector<4x8x8xf32> -> vector<8x4x8xf32>
    %40 = vector.shape_cast %39 : vector<8x4x8xf32> to vector<8x32xf32>
    %c0_16 = arith.constant 0 : index
    %c0_17 = arith.constant 0 : index
    %c0_18 = arith.constant 0 : index
    %41 = vector.load %arg4[%c0_16, %c0_17, %c0_18] : memref<1x8x32xf32, #tpu.memory_space<vmem>>, vector<1x8x32xf32>
    %42 = vector.shape_cast %41 : vector<1x8x32xf32> to vector<8x32xf32>
    %43 = vector.shape_cast %40 : vector<8x32xf32> to vector<1x8x32xf32>
    tpu.vector_store %arg4[%c0_16, %c0_17, %c0_18], %43 {strides = array<i32>} : memref<1x8x32xf32, #tpu.memory_space<vmem>>, vector<1x8x32xf32>,
    return
  }
  func.func @transform_0(%arg0: i32) -> (i32, i32, i32) {
    %c0_i32 = arith.constant 0 : i32
    %c0_i32_0 = arith.constant 0 : i32
    %c0_i32_1 = arith.constant 0 : i32
    return %arg0, %c0_i32, %c0_i32_0 : i32, i32, i32
  }
  func.func @transform_1(%arg0: i32) -> (i32, i32) {
    %c0_i32 = arith.constant 0 : i32
    %c0_i32_0 = arith.constant 0 : i32
    %c0_i32_1 = arith.constant 0 : i32
    return %c0_i32, %c0_i32_0 : i32, i32
  }
  func.func @transform_2(%arg0: i32) -> (i32, i32) {
    %c0_i32 = arith.constant 0 : i32
    %c0_i32_0 = arith.constant 0 : i32
    %c0_i32_1 = arith.constant 0 : i32
    return %c0_i32, %c0_i32_0 : i32, i32
  }
  func.func @transform_3(%arg0: i32) -> (i32, i32, i32) {
    %c0_i32 = arith.constant 0 : i32
    %c0_i32_0 = arith.constant 0 : i32
    %c0_i32_1 = arith.constant 0 : i32
    return %arg0, %c0_i32, %c0_i32_0 : i32, i32, i32
  }
  func.func @transform_4(%arg0: i32) -> (i32, i32, i32) {
    %c0_i32 = arith.constant 0 : i32
    %c0_i32_0 = arith.constant 0 : i32
    %c0_i32_1 = arith.constant 0 : i32
    return %arg0, %c0_i32, %c0_i32_0 : i32, i32, i32
  }
  func.func @transform_5(%arg0: i32) -> (i32, i32, i32) {
    %c0_i32 = arith.constant 0 : i32
    %c0_i32_0 = arith.constant 0 : i32
    %c0_i32_1 = arith.constant 0 : i32
    return %arg0, %c0_i32, %c0_i32_0 : i32, i32, i32
  }
}

</mosaic_0001>

<llo_original>
// kernel: tpu_custom_call.1
$region0: #{tpu_custom_call.1}
  #allocation0 [shape = 'u32[]', space=smem, size = 0x4, offset = 0x4, fixed_abs, tag = 'smem constant byte address 0x4 - core index']
  #allocation1 [shape = 'u32[144,128]{1,0:T(1,128)}', space=vmem, size = 0x12000, scoped, tag = 'internal scratch']
  %s0 = inlined_call_operand.hbm [shape: f32[2,8,32], index: 0, kind: input, shape index: {}]
  %s1 = inlined_call_operand.hbm [shape: bf16[32,96], index: 1, kind: input, shape index: {}]
  %s2 = inlined_call_operand.vmem [shape: f32[1,96], index: 2, kind: input, shape index: {}]
  %s3 = inlined_call_operand.hbm [shape: f32[2,8,32], index: 3, kind: output, shape index: {0}]
  %s4 = inlined_call_operand.hbm [shape: f32[2,8,32], index: 4, kind: output, shape index: {1}]
  %s5 = inlined_call_operand.hbm [shape: f32[2,8,32], index: 5, kind: output, shape index: {2}]
  %6 = xla_tuple %s3, %s4, %s5
  %s7 = sld [smem:[#allocation0]]
  $region69: #{tpu_custom_call.1} parent=0
    _
  %s9 = ssub.s32 1, %s7
  %s10 = scalar_select 0, %s9, %s7
  $region1: #{tpu_custom_call.1} parent=0
    #allocation2 [shape = 'u8[8192]{0}', space=vmem, size = 0x2000, scoped, tag = 'input window, operand 0']
    #allocation3 [shape = 's32[2]{0}', space=sflag, size = 0x8, scoped, tag = 'scoped memory for tpu_custom_call.1']
    #allocation4 [shape = 's32[2]{0}', space=sflag, size = 0x8, scoped, tag = 'scoped memory for tpu_custom_call.1']
    #allocation5 [shape = 'u8[8192]{0}', space=vmem, size = 0x2000, scoped, tag = 'input window, operand 1, single buffered']
    #allocation6 [shape = 's32[1]{0}', space=sflag, size = 0x4, scoped, tag = 'scoped memory for tpu_custom_call.1']
    #allocation7 [shape = 'u8[8192]{0}', space=vmem, size = 0x2000, scoped, tag = 'output window, operand 0']
    #allocation8 [shape = 'u8[8192]{0}', space=vmem, size = 0x2000, scoped, tag = 'output window, operand 1']
    #allocation9 [shape = 's32[2]{0}', space=sflag, size = 0x8, scoped, tag = 'scoped memory for tpu_custom_call.1']
    #allocation10 [shape = 'u8[8192]{0}', space=vmem, size = 0x2000, scoped, tag = 'output window, operand 2']
    %11 = vsyncpa [#allocation3], 0
    %s12 = scalar_lea.sflag [#allocation3], 1
    %13 = vsyncpa %s12, 0
    %14 = vsyncpa [#allocation6], 0
    %15 = vsyncpa [#allocation4], 0
    %s16 = scalar_lea.sflag [#allocation4], 1
    %17 = vsyncpa %s16, 0
    %18 = vsyncpa [#allocation9], 0
    %s19 = scalar_lea.sflag [#allocation9], 1
    %20 = vsyncpa %s19, 0
    loop: start=0, step=1, limit=4
    $region2: #{tpu_custom_call.1} parent=1 // loop_pre_header
      _
    $region3: #{tpu_custom_call.1} parent=1 // loop_header
      %s22 = sphi 0, %s26
      %p23 = scmp.ge.s32.totalorder %s22, 4
      %s32 = sphi 0, %s34
      %s35 = sphi 0, %s32
      %s36 = sphi 0, %s35
      %s52 = sphi 0, %s36
      %s56 = sphi 0, %s56
      %s58 = sphi 0, %s56
      %s59 = sphi 0, %s58
      %s73 = sphi 0, %s59
      %s77 = sphi 0, %s77
      %s79 = sphi 0, %s77
      %s80 = sphi 0, %s79
      %s94 = sphi 0, %s80
      %s100 = sphi 0, %s102
      %s103 = sphi 0, %s100
      %s104 = sphi 0, %s103
      %s120 = sphi 0, %s104
      %s126 = sphi 0, %s128
      %s129 = sphi 0, %s126
      %s130 = sphi 0, %s129
      %s146 = sphi 0, %s130
      %s152 = sphi 0, %s154
      %s155 = sphi 0, %s152
      %s156 = sphi 0, %s155
      %s172 = sphi 0, %s156
    $region4: #{tpu_custom_call.1} parent=1 // loop_header_branch
      %25 = sbr.rel (%p23) target = $region8
    $region5: #{tpu_custom_call.1} parent=1 // loop_body
      %s27 = ssub.s32 %s22, 1
      %s28 = ssub.s32 %s22, 2
      %s29 = sadd.s32 %s22, 1
      %s30 = ssub.s32 %s22, %s29
      %p31 = scmp.eq.s32.totalorder %s30, 0
      %s33 = sadd.s32 %s32, 1
      %s34 = scalar_select %p31, %s32, %s33
      %p37 = pneg %p31
      %p38 = scmp.eq.s32.totalorder %s22, 1
      %p39 = por %p37, %p38
      %p40 = scmp.ne.s32.totalorder %s32, %s35
      %p41 = scmp.eq.s32.totalorder %s22, 0
      %p42 = por %p40, %p41
      %p43 = scmp.ne.s32.totalorder %s32, %s35
      %p44 = scmp.eq.s32.totalorder %s27, 1
      %p45 = por %p43, %p44
      %p46 = scmp.ne.s32.totalorder %s35, %s36
      %p47 = scmp.eq.s32.totalorder %s27, 0
      %p48 = por %p46, %p47
      %p49 = scmp.ne.s32.totalorder %s35, %s36
      %p50 = scmp.eq.s32.totalorder %s28, 1
      %p51 = por %p49, %p50
      %p53 = scmp.ne.s32.totalorder %s36, %s52
      %p54 = scmp.eq.s32.totalorder %s28, 0
      %p55 = por %p53, %p54
      %s57 = sadd.s32 %s56, 1
      %p60 = scmp.eq.s32.totalorder %s22, 1
      %p61 = scmp.ne.s32.totalorder %s56, %s58
      %p62 = scmp.eq.s32.totalorder %s22, 0
      %p63 = por %p61, %p62
      %p64 = scmp.ne.s32.totalorder %s56, %s58
      %p65 = scmp.eq.s32.totalorder %s27, 1
      %p66 = por %p64, %p65
      %p67 = scmp.ne.s32.totalorder %s58, %s59
      %p68 = scmp.eq.s32.totalorder %s27, 0
      %p69 = por %p67, %p68
      %p70 = scmp.ne.s32.totalorder %s58, %s59
      %p71 = scmp.eq.s32.totalorder %s28, 1
      %p72 = por %p70, %p71
      %p74 = scmp.ne.s32.totalorder %s59, %s73
      %p75 = scmp.eq.s32.totalorder %s28, 0
      %p76 = por %p74, %p75
      %s78 = sadd.s32 %s77, 1
      %p81 = scmp.eq.s32.totalorder %s22, 1
      %p82 = scmp.ne.s32.totalorder %s77, %s79
      %p83 = scmp.eq.s32.totalorder %s22, 0
      %p84 = por %p82, %p83
      %p85 = scmp.ne.s32.totalorder %s77, %s79
      %p86 = scmp.eq.s32.totalorder %s27, 1
      %p87 = por %p85, %p86
      %p88 = scmp.ne.s32.totalorder %s79, %s80
      %p89 = scmp.eq.s32.totalorder %s27, 0
      %p90 = por %p88, %p89
      %p91 = scmp.ne.s32.totalorder %s79, %s80
      %p92 = scmp.eq.s32.totalorder %s28, 1
      %p93 = por %p91, %p92
      %p95 = scmp.ne.s32.totalorder %s80, %s94
      %p96 = scmp.eq.s32.totalorder %s28, 0
      %p97 = por %p95, %p96
      %s98 = ssub.s32 %s22, %s29
      %p99 = scmp.eq.s32.totalorder %s98, 0
      %s101 = sadd.s32 %s100, 1
      %s102 = scalar_select %p99, %s100, %s101
      %p105 = pneg %p99
      %p106 = scmp.eq.s32.totalorder %s22, 1
      %p107 = por %p105, %p106
      %p108 = scmp.ne.s32.totalorder %s100, %s103
      %p109 = scmp.eq.s32.totalorder %s22, 0
      %p110 = por %p108, %p109
      %p111 = scmp.ne.s32.totalorder %s100, %s103
      %p112 = scmp.eq.s32.totalorder %s27, 1
      %p113 = por %p111, %p112
      %p114 = scmp.ne.s32.totalorder %s103, %s104
      %p115 = scmp.eq.s32.totalorder %s27, 0
      %p116 = por %p114, %p115
      %p117 = scmp.ne.s32.totalorder %s103, %s104
      %p118 = scmp.eq.s32.totalorder %s28, 1
      %p119 = por %p117, %p118
      %p121 = scmp.ne.s32.totalorder %s104, %s120
      %p122 = scmp.eq.s32.totalorder %s28, 0
      %p123 = por %p121, %p122
      %s124 = ssub.s32 %s22, %s29
      %p125 = scmp.eq.s32.totalorder %s124, 0
      %s127 = sadd.s32 %s126, 1
      %s128 = scalar_select %p125, %s126, %s127
      %p131 = pneg %p125
      %p132 = scmp.eq.s32.totalorder %s22, 1
      %p133 = por %p131, %p132
      %p134 = scmp.ne.s32.totalorder %s126, %s129
      %p135 = scmp.eq.s32.totalorder %s22, 0
      %p136 = por %p134, %p135
      %p137 = scmp.ne.s32.totalorder %s126, %s129
      %p138 = scmp.eq.s32.totalorder %s27, 1
      %p139 = por %p137, %p138
      %p140 = scmp.ne.s32.totalorder %s129, %s130
      %p141 = scmp.eq.s32.totalorder %s27, 0
      %p142 = por %p140, %p141
      %p143 = scmp.ne.s32.totalorder %s129, %s130
      %p144 = scmp.eq.s32.totalorder %s28, 1
      %p145 = por %p143, %p144
      %p147 = scmp.ne.s32.totalorder %s130, %s146
      %p148 = scmp.eq.s32.totalorder %s28, 0
      %p149 = por %p147, %p148
      %s150 = ssub.s32 %s22, %s29
      %p151 = scmp.eq.s32.totalorder %s150, 0
      %s153 = sadd.s32 %s152, 1
      %s154 = scalar_select %p151, %s152, %s153
      %p157 = pneg %p151
      %p158 = scmp.eq.s32.totalorder %s22, 1
      %p159 = por %p157, %p158
      %p160 = scmp.ne.s32.totalorder %s152, %s155
      %p161 = scmp.eq.s32.totalorder %s22, 0
      %p162 = por %p160, %p161
      %p163 = scmp.ne.s32.totalorder %s152, %s155
      %p164 = scmp.eq.s32.totalorder %s27, 1
      %p165 = por %p163, %p164
      %p166 = scmp.ne.s32.totalorder %s155, %s156
      %p167 = scmp.eq.s32.totalorder %s27, 0
      %p168 = por %p166, %p167
      %p169 = scmp.ne.s32.totalorder %s155, %s156
      %p170 = scmp.eq.s32.totalorder %s28, 1
      %p171 = por %p169, %p170
      %p173 = scmp.ne.s32.totalorder %s156, %s172
      %p174 = scmp.eq.s32.totalorder %s28, 0
      %p175 = por %p173, %p174
      %p176 = scmp.le.s32.totalorder 1, %s22
      %p177 = scmp.lt.s32.totalorder %s22, 3
      %p178 = pnand %p176, %p177
      %p179 = pneg %p178
      // Predicated region
      $region9: #{tpu_custom_call.1} parent=5 // pred_check
        _
      $region10: #{tpu_custom_call.1} parent=5 // pred_check_branch
        %181 = sbr.rel (%p178) target = $region12
      $region11: #{tpu_custom_call.1} parent=5 // pred_region
        %s182 = ssub.s32 %s22, 1
        // Predicated region
        $region13: #{tpu_custom_call.1} parent=11 // pred_check
          %p183 = pneg %p69
        $region14: #{tpu_custom_call.1} parent=11 // pred_check_branch
          %185 = sbr.rel (%p183) target = $region16
        $region15: #{tpu_custom_call.1} parent=11 // pred_region
          %s187 = ssub.s32 256, 256
          %188 = vsyncadd [#allocation6], %s187
          %s189 = sshll.u32 [#allocation5], 4
          %s190 = int_to_ptr.vmem [resolvable:$true] %s189
          %195 = dma.hbm_to_vmem [thread:$0]  %s1, 256, %s190, [#allocation6], 64, 64, 4
        $region16: #{tpu_custom_call.1} parent=11 // pred_fallthru
          _
        // Predicated region
        $region17: #{tpu_custom_call.1} parent=11 // pred_check
          %p196 = pneg %p90
        $region18: #{tpu_custom_call.1} parent=11 // pred_check_branch
          %198 = sbr.rel (%p196) target = $region20
        $region19: #{tpu_custom_call.1} parent=11 // pred_region
          _
        $region20: #{tpu_custom_call.1} parent=11 // pred_fallthru
          _
      $region12: #{tpu_custom_call.1} parent=5 // pred_fallthru
        _
      %p199 = scmp.lt.s32.totalorder %s22, 2
      // Predicated region
      $region21: #{tpu_custom_call.1} parent=5 // pred_check
        %p200 = pneg %p199
      $region22: #{tpu_custom_call.1} parent=5 // pred_check_branch
        %202 = sbr.rel (%p200) target = $region24
      $region23: #{tpu_custom_call.1} parent=5 // pred_region
        // Predicated region
        $region25: #{tpu_custom_call.1} parent=23 // pred_check
          %p203 = pneg %p42
        $region26: #{tpu_custom_call.1} parent=23 // pred_check_branch
          %205 = sbr.rel (%p203) target = $region28
        $region27: #{tpu_custom_call.1} parent=23 // pred_region
          %s206 = sand.u32 %s32, 1
          %s207 = scalar_lea.sflag [#allocation3], %s206
          %s208 = sand.u32 %s32, 1
          %s209 = smul.addr %s208, 8
          %s210 = scalar_lea.vmem [#allocation2], %s209
          %s212 = ssub.s32 128, 128
          %213 = vsyncadd %s207, %s212
          %s214 = smul.addr %s22, 128
          %s215 = scalar_lea.hbm %s0, %s214
          %s217 = sshll.u32 %s210, 4
          %s218 = int_to_ptr.vmem [resolvable:$true] %s217
          %220 = dma.hbm_to_vmem [thread:$0]  %s215, 128, %s218, %s207
        $region28: #{tpu_custom_call.1} parent=23 // pred_fallthru
          _
      $region24: #{tpu_custom_call.1} parent=5 // pred_fallthru
        _
      %p221 = scmp.le.s32.totalorder 1, %s22
      %p222 = scmp.lt.s32.totalorder %s22, 3
      %p223 = pnand %p221, %p222
      %p224 = pneg %p223
      // Predicated region
      $region29: #{tpu_custom_call.1} parent=5 // pred_check
        _
      $region30: #{tpu_custom_call.1} parent=5 // pred_check_branch
        %226 = sbr.rel (%p223) target = $region32
      $region31: #{tpu_custom_call.1} parent=5 // pred_region
        %s227 = ssub.s32 %s22, 1
        %s228 = sand.u32 %s35, 1
        %s229 = scalar_lea.sflag [#allocation3], %s228
        %s230 = sand.u32 %s35, 1
        %s231 = smul.addr %s230, 8
        %s232 = scalar_lea.vmem [#allocation2], %s231
        // Predicated region
        $region33: #{tpu_custom_call.1} parent=31 // pred_check
          %p233 = pneg %p48
        $region34: #{tpu_custom_call.1} parent=31 // pred_check_branch
          %235 = sbr.rel (%p233) target = $region36
        $region35: #{tpu_custom_call.1} parent=31 // pred_region
          %236 = dma.done %s229, 128
        $region36: #{tpu_custom_call.1} parent=31 // pred_fallthru
          _
        // Predicated region
        $region37: #{tpu_custom_call.1} parent=31 // pred_check
          %p237 = pneg %p69
        $region38: #{tpu_custom_call.1} parent=31 // pred_check_branch
          %239 = sbr.rel (%p237) target = $region40
        $region39: #{tpu_custom_call.1} parent=31 // pred_region
          %240 = dma.done [#allocation6], 256
        $region40: #{tpu_custom_call.1} parent=31 // pred_fallthru
          _
        %s241 = sand.u32 %s35, 1
        %s242 = scalar_lea.sflag [#allocation3], %s241
        %s243 = sand.u32 %s35, 1
        %s244 = smul.addr %s243, 8
        %s245 = scalar_lea.vmem [#allocation2], %s244
        %p246 = pneg %p48
        %p247 = pneg %p45
        %p248 = pneg %p69
        %p249 = pneg %p66
        %p250 = pneg %p90
        %p251 = pneg %p87
        %p252 = pneg %p116
        %p253 = pneg %p113
        %s254 = sand.u32 %s103, 1
        %s255 = scalar_lea.sflag [#allocation4], %s254
        %s256 = sand.u32 %s103, 1
        %s257 = smul.addr %s256, 8
        %s258 = scalar_lea.vmem [#allocation7], %s257
        %p259 = pneg %p142
        %p260 = pneg %p139
        %s261 = sand.u32 %s27, 1
        %s262 = scalar_lea.sflag [#allocation9], %s261
        %s263 = sand.u32 %s129, 1
        %s264 = smul.addr %s263, 8
        %s265 = scalar_lea.vmem [#allocation8], %s264
        %p266 = pneg %p168
        %p267 = pneg %p165
        %s268 = sand.u32 %s27, 1
        %s269 = scalar_lea.sflag [#allocation9], %s268
        %s270 = sand.u32 %s155, 1
        %s271 = smul.addr %s270, 8
        %s272 = scalar_lea.vmem [#allocation10], %s271
        %v274 = vld [vmem:[%s232] sm:$0xff]
        %v275 = vpack.c.bf16 %v274, %v274
        %v276 = vld [vmem:[#allocation5] sm:$0xf]
        %v277 = vld [vmem:[#allocation5 + $0x4] sm:$0xf]
        %v278 = vld [vmem:[#allocation5 + $0x8] sm:$0xf]
        %v279 = vld [vmem:[#allocation5 + $0xc] sm:$0xf]
        %v280 = vld [vmem:[%s2] sm:$0x1]
        %v282 = vlaneseq
        %v283 = vshrl.u32 %v282, 7
        %v284 = vsub.s32 0, %v283
        %v285 = vrot.slane %v280, %v284
        %v291 = vunpack.c.l.b16 %v276
        %v292 = vunpack.c.l.b16 %v277
        %v293 = vunpack.c.l.b16 %v278
        %v294 = vunpack.c.l.b16 %v279
        %v295 = vpack.c.b16 %v292, %v291
        %v296 = vpack.c.b16 %v294, %v293
        %vm299 = vcmask 261120
        %v301 = vsel %vm299, %v275, 0
        %303 = vmatprep.subr.bf16.mxu0 0
        %304 = vmatpush1.bf16.msra.mxu0 %v295
        %305 = vmatprep.subr.bf16.mxu0 0
        %306 = vmatpush1.bf16.msra.mxu0 %v296
        %307 = vmatprep.subr.bf16.mxu0 0
        %308 = vmatpush1.bf16.msra.mxu0 0
        %309 = vmatprep.subr.bf16.mxu0 0
        %310 = vmatpush1.bf16.msra.mxu0 0
        %311 = vmatprep.subr.bf16.mxu0 0
        %312 = vmatpush1.bf16.msra.mxu0 0
        %313 = vmatprep.subr.bf16.mxu0 0
        %314 = vmatpush1.bf16.msra.mxu0 0
        %315 = vmatprep.subr.bf16.mxu0 0
        %316 = vmatpush1.bf16.msra.mxu0 0
        %317 = vmatprep.subr.bf16.mxu0 0
        %318 = vmatpush1.bf16.msra.mxu0 0
        %319 = vmatprep.subr.bf16.mxu0 0
        %320 = vmatpush1.bf16.msra.mxu0 0
        %321 = vmatprep.subr.bf16.mxu0 0
        %322 = vmatpush1.bf16.msra.mxu0 0
        %323 = vmatprep.subr.bf16.mxu0 0
        %324 = vmatpush1.bf16.msra.mxu0 0
        %325 = vmatprep.subr.bf16.mxu0 0
        %326 = vmatpush1.bf16.msra.mxu0 0
        %327 = vmatprep.subr.bf16.mxu0 0
        %328 = vmatpush1.bf16.msra.mxu0 0
        %329 = vmatprep.subr.bf16.mxu0 0
        %330 = vmatpush1.bf16.msra.mxu0 0
        %331 = vmatprep.subr.bf16.mxu0 0
        %332 = vmatpush1.bf16.msra.mxu0 0
        %333 = vmatprep.subr.bf16.mxu0 0
        %334 = vmatpush1.bf16.msra.mxu0 0
        %335 = vmatprep.mubr.bf16.mxu0 0
        %336 = vmatmul.mubr.bf16.gmra.mrb[0].mxu0 %v301
        %v337 = vpop.f32.mrb[0].mxu0
        %v338 = vadd.f32 %v285, %v337
        %v339 = vpop.f32.mrb[0].mxu0
        %v340 = vpop.f32.mrb[0].mxu0
        %v341 = vpop.f32.mrb[0].mxu0
        %342 = vdwg.mxu0
        %344 = vrot.lane.b32.xlu0 %v338, 96
        %v345 = vpop.permute.xlu0 %344
        %347 = vst.msk [vmem:[%s265] sm:$0xff] %vm299, %v345
        %348 = vrot.lane.b32.xlu0 %v338, 64
        %v349 = vpop.permute.xlu0 %348
        %351 = vst.msk [vmem:[%s272] sm:$0xff] %vm299, %v349
        %v352 = vpack.c.bf16 %v338, %v338
        %354 = vrot.lane.b32.xlu0 %v352, 120
        %v355 = vpop.permute.xlu0 %354
        %356 = vrot.lane.b32.xlu0 %v352, 112
        %v357 = vpop.permute.xlu0 %356
        %358 = vrot.lane.b32.xlu0 %v352, 104
        %v359 = vpop.permute.xlu0 %358
        %v361 = vunpack.c.l.s4 1983009808
        %v362 = vunpack.c.0.s8 %v361
        %v363 = vlaneseq
        %v364 = vshrl.u32 %v363, 7
        %v365 = vsub.s32 %v362, %v364
        %v366 = vrot.slane %v352, %v365
        %v369 = vunpack.c.l.s4 1983009808
        %v370 = vunpack.c.0.s8 %v369
        %v371 = vlaneseq
        %v372 = vshrl.u32 %v371, 7
        %v373 = vsub.s32 %v370, %v372
        %v374 = vrot.slane %v357, %v373
        %v375 = vcombine.low %v366, %v374
        %v376 = vcombine.high %v366, %v374
        %v378 = vunpack.c.l.s4 1934713408
        %v379 = vunpack.c.0.s8 %v378
        %v380 = vlaneseq
        %v381 = vshrl.u32 %v380, 7
        %v382 = vsub.s32 %v379, %v381
        %v383 = vrot.slane %v375, %v382
        %v385 = vunpack.c.l.s4 1934713408
        %v386 = vunpack.c.0.s8 %v385
        %v387 = vlaneseq
        %v388 = vshrl.u32 %v387, 7
        %v389 = vsub.s32 %v386, %v388
        %v390 = vrot.slane %v376, %v389
        %v391 = vcombine.high %v383, 0
        %v392 = vcombine.high %v390, 0
        %v395 = vunpack.c.l.s4 1983009808
        %v396 = vunpack.c.0.s8 %v395
        %v397 = vlaneseq
        %v398 = vshrl.u32 %v397, 7
        %v399 = vsub.s32 %v396, %v398
        %v400 = vrot.slane %v355, %v399
        %v403 = vunpack.c.l.s4 1983009808
        %v404 = vunpack.c.0.s8 %v403
        %v405 = vlaneseq
        %v406 = vshrl.u32 %v405, 7
        %v407 = vsub.s32 %v404, %v406
        %v408 = vrot.slane %v359, %v407
        %v409 = vcombine.low %v400, %v408
        %v410 = vcombine.high %v400, %v408
        %v412 = vunpack.c.l.s4 1934713408
        %v413 = vunpack.c.0.s8 %v412
        %v414 = vlaneseq
        %v415 = vshrl.u32 %v414, 7
        %v416 = vsub.s32 %v413, %v415
        %v417 = vrot.slane %v409, %v416
        %v419 = vunpack.c.l.s4 1934713408
        %v420 = vunpack.c.0.s8 %v419
        %v421 = vlaneseq
        %v422 = vshrl.u32 %v421, 7
        %v423 = vsub.s32 %v420, %v422
        %v424 = vrot.slane %v410, %v423
        %v425 = vcombine.high %v417, 0
        %v426 = vcombine.high %v424, 0
        %v429 = vpack.i.b16 %v417, %v383
        %v431 = vshrl.u32 %v383, 16
        %v432 = vshrl.u32 %v417, 16
        %v433 = vpack.i.b16 %v432, %v431
        %v437 = vpack.i.b16 %v425, %v391
        %v439 = vshrl.u32 %v391, 16
        %v440 = vshrl.u32 %v425, 16
        %v441 = vpack.i.b16 %v440, %v439
        %v445 = vpack.i.b16 %v424, %v390
        %v447 = vshrl.u32 %v390, 16
        %v448 = vshrl.u32 %v424, 16
        %v449 = vpack.i.b16 %v448, %v447
        %v453 = vpack.i.b16 %v426, %v392
        %v455 = vshrl.u32 %v392, 16
        %v456 = vshrl.u32 %v426, 16
        %v457 = vpack.i.b16 %v456, %v455
        %v459 = vcombine.low %v429, %v445
        %v461 = vunpack.c.l.s4 1983009808
        %v462 = vunpack.c.0.s8 %v461
        %v463 = vlaneseq
        %v464 = vshrl.u32 %v463, 7
        %v465 = vsub.s32 %v462, %v464
        %v466 = vrot.slane %v459, %v465
        %v467 = vcombine.low %v437, %v453
        %v469 = vunpack.c.l.s4 1983009808
        %v470 = vunpack.c.0.s8 %v469
        %v471 = vlaneseq
        %v472 = vshrl.u32 %v471, 7
        %v473 = vsub.s32 %v470, %v472
        %v474 = vrot.slane %v467, %v473
        %v475 = vcombine.low %v466, %v474
        %v477 = vunpack.c.l.s4 1934713408
        %v478 = vunpack.c.0.s8 %v477
        %v479 = vlaneseq
        %v480 = vshrl.u32 %v479, 7
        %v481 = vsub.s32 %v478, %v480
        %v482 = vrot.slane %v475, %v481
        %v483 = vcombine.high %v482, 0
        %v484 = vcombine.low %v433, %v449
        %v486 = vunpack.c.l.s4 1983009808
        %v487 = vunpack.c.0.s8 %v486
        %v488 = vlaneseq
        %v489 = vshrl.u32 %v488, 7
        %v490 = vsub.s32 %v487, %v489
        %v491 = vrot.slane %v484, %v490
        %v492 = vcombine.low %v441, %v457
        %v494 = vunpack.c.l.s4 1983009808
        %v495 = vunpack.c.0.s8 %v494
        %v496 = vlaneseq
        %v497 = vshrl.u32 %v496, 7
        %v498 = vsub.s32 %v495, %v497
        %v499 = vrot.slane %v492, %v498
        %v500 = vcombine.low %v491, %v499
        %v502 = vunpack.c.l.s4 1934713408
        %v503 = vunpack.c.0.s8 %v502
        %v504 = vlaneseq
        %v505 = vshrl.u32 %v504, 7
        %v506 = vsub.s32 %v503, %v505
        %v507 = vrot.slane %v500, %v506
        %v508 = vcombine.high %v507, 0
        %v511 = vpack.i.b16 %v507, %v482
        %v512 = vshrl.u32 %v482, 16
        %v513 = vshrl.u32 %v507, 16
        %v514 = vpack.i.b16 %v513, %v512
        %v517 = vpack.i.b16 %v508, %v483
        %v518 = vshrl.u32 %v483, 16
        %v519 = vshrl.u32 %v508, 16
        %v520 = vpack.i.b16 %v519, %v518
        %521 = vrot.lane.b32.xlu0 %v352, 96
        %v522 = vpop.permute.xlu0 %521
        %523 = vrot.lane.b32.xlu0 %v355, 96
        %v524 = vpop.permute.xlu0 %523
        %525 = vrot.lane.b32.xlu0 %v357, 96
        %v526 = vpop.permute.xlu0 %525
        %527 = vrot.lane.b32.xlu0 %v359, 96
        %v528 = vpop.permute.xlu0 %527
        %v531 = vunpack.c.l.s4 1983009808
        %v532 = vunpack.c.0.s8 %v531
        %v533 = vlaneseq
        %v534 = vshrl.u32 %v533, 7
        %v535 = vsub.s32 %v532, %v534
        %v536 = vrot.slane %v522, %v535
        %v539 = vunpack.c.l.s4 1983009808
        %v540 = vunpack.c.0.s8 %v539
        %v541 = vlaneseq
        %v542 = vshrl.u32 %v541, 7
        %v543 = vsub.s32 %v540, %v542
        %v544 = vrot.slane %v526, %v543
        %v545 = vcombine.low %v536, %v544
        %v546 = vcombine.high %v536, %v544
        %v548 = vunpack.c.l.s4 1934713408
        %v549 = vunpack.c.0.s8 %v548
        %v550 = vlaneseq
        %v551 = vshrl.u32 %v550, 7
        %v552 = vsub.s32 %v549, %v551
        %v553 = vrot.slane %v545, %v552
        %v555 = vunpack.c.l.s4 1934713408
        %v556 = vunpack.c.0.s8 %v555
        %v557 = vlaneseq
        %v558 = vshrl.u32 %v557, 7
        %v559 = vsub.s32 %v556, %v558
        %v560 = vrot.slane %v546, %v559
        %v561 = vcombine.high %v553, 0
        %v562 = vcombine.high %v560, 0
        %v565 = vunpack.c.l.s4 1983009808
        %v566 = vunpack.c.0.s8 %v565
        %v567 = vlaneseq
        %v568 = vshrl.u32 %v567, 7
        %v569 = vsub.s32 %v566, %v568
        %v570 = vrot.slane %v524, %v569
        %v573 = vunpack.c.l.s4 1983009808
        %v574 = vunpack.c.0.s8 %v573
        %v575 = vlaneseq
        %v576 = vshrl.u32 %v575, 7
        %v577 = vsub.s32 %v574, %v576
        %v578 = vrot.slane %v528, %v577
        %v579 = vcombine.low %v570, %v578
        %v580 = vcombine.high %v570, %v578
        %v582 = vunpack.c.l.s4 1934713408
        %v583 = vunpack.c.0.s8 %v582
        %v584 = vlaneseq
        %v585 = vshrl.u32 %v584, 7
        %v586 = vsub.s32 %v583, %v585
        %v587 = vrot.slane %v579, %v586
        %v589 = vunpack.c.l.s4 1934713408
        %v590 = vunpack.c.0.s8 %v589
        %v591 = vlaneseq
        %v592 = vshrl.u32 %v591, 7
        %v593 = vsub.s32 %v590, %v592
        %v594 = vrot.slane %v580, %v593
        %v595 = vcombine.high %v587, 0
        %v596 = vcombine.high %v594, 0
        %v599 = vpack.i.b16 %v587, %v553
        %v601 = vshrl.u32 %v553, 16
        %v602 = vshrl.u32 %v587, 16
        %v603 = vpack.i.b16 %v602, %v601
        %v607 = vpack.i.b16 %v595, %v561
        %v609 = vshrl.u32 %v561, 16
        %v610 = vshrl.u32 %v595, 16
        %v611 = vpack.i.b16 %v610, %v609
        %v615 = vpack.i.b16 %v594, %v560
        %v617 = vshrl.u32 %v560, 16
        %v618 = vshrl.u32 %v594, 16
        %v619 = vpack.i.b16 %v618, %v617
        %v623 = vpack.i.b16 %v596, %v562
        %v625 = vshrl.u32 %v562, 16
        %v626 = vshrl.u32 %v596, 16
        %v627 = vpack.i.b16 %v626, %v625
        %v629 = vcombine.low %v599, %v615
        %v631 = vunpack.c.l.s4 1983009808
        %v632 = vunpack.c.0.s8 %v631
        %v633 = vlaneseq
        %v634 = vshrl.u32 %v633, 7
        %v635 = vsub.s32 %v632, %v634
        %v636 = vrot.slane %v629, %v635
        %v637 = vcombine.low %v607, %v623
        %v639 = vunpack.c.l.s4 1983009808
        %v640 = vunpack.c.0.s8 %v639
        %v641 = vlaneseq
        %v642 = vshrl.u32 %v641, 7
        %v643 = vsub.s32 %v640, %v642
        %v644 = vrot.slane %v637, %v643
        %v645 = vcombine.low %v636, %v644
        %v647 = vunpack.c.l.s4 1934713408
        %v648 = vunpack.c.0.s8 %v647
        %v649 = vlaneseq
        %v650 = vshrl.u32 %v649, 7
        %v651 = vsub.s32 %v648, %v650
        %v652 = vrot.slane %v645, %v651
        %v653 = vcombine.high %v652, 0
        %v654 = vcombine.low %v603, %v619
        %v656 = vunpack.c.l.s4 1983009808
        %v657 = vunpack.c.0.s8 %v656
        %v658 = vlaneseq
        %v659 = vshrl.u32 %v658, 7
        %v660 = vsub.s32 %v657, %v659
        %v661 = vrot.slane %v654, %v660
        %v662 = vcombine.low %v611, %v627
        %v664 = vunpack.c.l.s4 1983009808
        %v665 = vunpack.c.0.s8 %v664
        %v666 = vlaneseq
        %v667 = vshrl.u32 %v666, 7
        %v668 = vsub.s32 %v665, %v667
        %v669 = vrot.slane %v662, %v668
        %v670 = vcombine.low %v661, %v669
        %v672 = vunpack.c.l.s4 1934713408
        %v673 = vunpack.c.0.s8 %v672
        %v674 = vlaneseq
        %v675 = vshrl.u32 %v674, 7
        %v676 = vsub.s32 %v673, %v675
        %v677 = vrot.slane %v670, %v676
        %v678 = vcombine.high %v677, 0
        %v681 = vpack.i.b16 %v677, %v652
        %v682 = vshrl.u32 %v652, 16
        %v683 = vshrl.u32 %v677, 16
        %v684 = vpack.i.b16 %v683, %v682
        %v687 = vpack.i.b16 %v678, %v653
        %v688 = vshrl.u32 %v653, 16
        %v689 = vshrl.u32 %v678, 16
        %v690 = vpack.i.b16 %v689, %v688
        %691 = vrot.lane.b32.xlu0 %v352, 64
        %v692 = vpop.permute.xlu0 %691
        %693 = vrot.lane.b32.xlu0 %v355, 64
        %v694 = vpop.permute.xlu0 %693
        %695 = vrot.lane.b32.xlu0 %v357, 64
        %v696 = vpop.permute.xlu0 %695
        %697 = vrot.lane.b32.xlu0 %v359, 64
        %v698 = vpop.permute.xlu0 %697
        %v701 = vunpack.c.l.s4 1983009808
        %v702 = vunpack.c.0.s8 %v701
        %v703 = vlaneseq
        %v704 = vshrl.u32 %v703, 7
        %v705 = vsub.s32 %v702, %v704
        %v706 = vrot.slane %v692, %v705
        %v709 = vunpack.c.l.s4 1983009808
        %v710 = vunpack.c.0.s8 %v709
        %v711 = vlaneseq
        %v712 = vshrl.u32 %v711, 7
        %v713 = vsub.s32 %v710, %v712
        %v714 = vrot.slane %v696, %v713
        %v715 = vcombine.low %v706, %v714
        %v716 = vcombine.high %v706, %v714
        %v718 = vunpack.c.l.s4 1934713408
        %v719 = vunpack.c.0.s8 %v718
        %v720 = vlaneseq
        %v721 = vshrl.u32 %v720, 7
        %v722 = vsub.s32 %v719, %v721
        %v723 = vrot.slane %v715, %v722
        %v725 = vunpack.c.l.s4 1934713408
        %v726 = vunpack.c.0.s8 %v725
        %v727 = vlaneseq
        %v728 = vshrl.u32 %v727, 7
        %v729 = vsub.s32 %v726, %v728
        %v730 = vrot.slane %v716, %v729
        %v731 = vcombine.high %v723, 0
        %v732 = vcombine.high %v730, 0
        %v735 = vunpack.c.l.s4 1983009808
        %v736 = vunpack.c.0.s8 %v735
        %v737 = vlaneseq
        %v738 = vshrl.u32 %v737, 7
        %v739 = vsub.s32 %v736, %v738
        %v740 = vrot.slane %v694, %v739
        %v743 = vunpack.c.l.s4 1983009808
        %v744 = vunpack.c.0.s8 %v743
        %v745 = vlaneseq
        %v746 = vshrl.u32 %v745, 7
        %v747 = vsub.s32 %v744, %v746
        %v748 = vrot.slane %v698, %v747
        %v749 = vcombine.low %v740, %v748
        %v750 = vcombine.high %v740, %v748
        %v752 = vunpack.c.l.s4 1934713408
        %v753 = vunpack.c.0.s8 %v752
        %v754 = vlaneseq
        %v755 = vshrl.u32 %v754, 7
        %v756 = vsub.s32 %v753, %v755
        %v757 = vrot.slane %v749, %v756
        %v759 = vunpack.c.l.s4 1934713408
        %v760 = vunpack.c.0.s8 %v759
        %v761 = vlaneseq
        %v762 = vshrl.u32 %v761, 7
        %v763 = vsub.s32 %v760, %v762
        %v764 = vrot.slane %v750, %v763
        %v765 = vcombine.high %v757, 0
        %v766 = vcombine.high %v764, 0
        %v769 = vpack.i.b16 %v757, %v723
        %v771 = vshrl.u32 %v723, 16
        %v772 = vshrl.u32 %v757, 16
        %v773 = vpack.i.b16 %v772, %v771
        %v777 = vpack.i.b16 %v765, %v731
        %v779 = vshrl.u32 %v731, 16
        %v780 = vshrl.u32 %v765, 16
        %v781 = vpack.i.b16 %v780, %v779
        %v785 = vpack.i.b16 %v764, %v730
        %v787 = vshrl.u32 %v730, 16
        %v788 = vshrl.u32 %v764, 16
        %v789 = vpack.i.b16 %v788, %v787
        %v793 = vpack.i.b16 %v766, %v732
        %v795 = vshrl.u32 %v732, 16
        %v796 = vshrl.u32 %v766, 16
        %v797 = vpack.i.b16 %v796, %v795
        %v799 = vcombine.low %v769, %v785
        %v801 = vunpack.c.l.s4 1983009808
        %v802 = vunpack.c.0.s8 %v801
        %v803 = vlaneseq
        %v804 = vshrl.u32 %v803, 7
        %v805 = vsub.s32 %v802, %v804
        %v806 = vrot.slane %v799, %v805
        %v807 = vcombine.low %v777, %v793
        %v809 = vunpack.c.l.s4 1983009808
        %v810 = vunpack.c.0.s8 %v809
        %v811 = vlaneseq
        %v812 = vshrl.u32 %v811, 7
        %v813 = vsub.s32 %v810, %v812
        %v814 = vrot.slane %v807, %v813
        %v815 = vcombine.low %v806, %v814
        %v817 = vunpack.c.l.s4 1934713408
        %v818 = vunpack.c.0.s8 %v817
        %v819 = vlaneseq
        %v820 = vshrl.u32 %v819, 7
        %v821 = vsub.s32 %v818, %v820
        %v822 = vrot.slane %v815, %v821
        %v823 = vcombine.high %v822, 0
        %v824 = vcombine.low %v773, %v789
        %v826 = vunpack.c.l.s4 1983009808
        %v827 = vunpack.c.0.s8 %v826
        %v828 = vlaneseq
        %v829 = vshrl.u32 %v828, 7
        %v830 = vsub.s32 %v827, %v829
        %v831 = vrot.slane %v824, %v830
        %v832 = vcombine.low %v781, %v797
        %v834 = vunpack.c.l.s4 1983009808
        %v835 = vunpack.c.0.s8 %v834
        %v836 = vlaneseq
        %v837 = vshrl.u32 %v836, 7
        %v838 = vsub.s32 %v835, %v837
        %v839 = vrot.slane %v832, %v838
        %v840 = vcombine.low %v831, %v839
        %v842 = vunpack.c.l.s4 1934713408
        %v843 = vunpack.c.0.s8 %v842
        %v844 = vlaneseq
        %v845 = vshrl.u32 %v844, 7
        %v846 = vsub.s32 %v843, %v845
        %v847 = vrot.slane %v840, %v846
        %v848 = vcombine.high %v847, 0
        %v851 = vpack.i.b16 %v847, %v822
        %v852 = vshrl.u32 %v822, 16
        %v853 = vshrl.u32 %v847, 16
        %v854 = vpack.i.b16 %v853, %v852
        %v857 = vpack.i.b16 %v848, %v823
        %v858 = vshrl.u32 %v823, 16
        %v859 = vshrl.u32 %v848, 16
        %v860 = vpack.i.b16 %v859, %v858
        %vm861 = vcmask 64512
        %v863 = vsel %vm861, %v511, 0
        %v866 = vsel %vm861, %v681, 0
        %868 = vmatprep.subr.bf16.mxu0 0
        %869 = vmatpush1.bf16.xpose.msra.mxu0 %v866
        %870 = vmatprep.subr.bf16.mxu0 0
        %871 = vmatpush1.bf16.xpose.msra.mxu0 0
        %872 = vmatprep.subr.bf16.mxu0 0
        %873 = vmatpush1.bf16.xpose.msra.mxu0 0
        %874 = vmatprep.subr.bf16.mxu0 0
        %875 = vmatpush1.bf16.xpose.msra.mxu0 0
        %876 = vmatprep.subr.bf16.mxu0 0
        %877 = vmatpush1.bf16.xpose.msra.mxu0 0
        %878 = vmatprep.subr.bf16.mxu0 0
        %879 = vmatpush1.bf16.xpose.msra.mxu0 0
        %880 = vmatprep.subr.bf16.mxu0 0
        %881 = vmatpush1.bf16.xpose.msra.mxu0 0
        %882 = vmatprep.subr.bf16.mxu0 0
        %883 = vmatpush1.bf16.xpose.msra.mxu0 0
        %884 = vmatprep.subr.bf16.mxu0 0
        %885 = vmatpush1.bf16.xpose.msra.mxu0 0
        %886 = vmatprep.subr.bf16.mxu0 0
        %887 = vmatpush1.bf16.xpose.msra.mxu0 0
        %888 = vmatprep.subr.bf16.mxu0 0
        %889 = vmatpush1.bf16.xpose.msra.mxu0 0
        %890 = vmatprep.subr.bf16.mxu0 0
        %891 = vmatpush1.bf16.xpose.msra.mxu0 0
        %892 = vmatprep.subr.bf16.mxu0 0
        %893 = vmatpush1.bf16.xpose.msra.mxu0 0
        %894 = vmatprep.subr.bf16.mxu0 0
        %895 = vmatpush1.bf16.xpose.msra.mxu0 0
        %896 = vmatprep.subr.bf16.mxu0 0
        %897 = vmatpush1.bf16.xpose.msra.mxu0 0
        %898 = vmatprep.subr.bf16.mxu0 0
        %899 = vmatpush1.bf16.xpose.msra.mxu0 0
        %900 = vmatprep.mubr.bf16.mxu0 0
        %901 = vmatmul.mubr.bf16.gmra.mrb[0].mxu0 %v863
        %v902 = vpop.f32.mrb[0].mxu0
        %v903 = vadd.f32 0.0, %v902
        %v904 = vpop.f32.mrb[0].mxu0
        %v905 = vpop.f32.mrb[0].mxu0
        %v906 = vpop.f32.mrb[0].mxu0
        %907 = vdwg.mxu0
        %v909 = vsel %vm861, %v514, 0
        %v912 = vsel %vm861, %v684, 0
        %914 = vmatprep.subr.bf16.mxu0 0
        %915 = vmatpush1.bf16.xpose.msra.mxu0 %v912
        %916 = vmatprep.subr.bf16.mxu0 0
        %917 = vmatpush1.bf16.xpose.msra.mxu0 0
        %918 = vmatprep.subr.bf16.mxu0 0
        %919 = vmatpush1.bf16.xpose.msra.mxu0 0
        %920 = vmatprep.subr.bf16.mxu0 0
        %921 = vmatpush1.bf16.xpose.msra.mxu0 0
        %922 = vmatprep.subr.bf16.mxu0 0
        %923 = vmatpush1.bf16.xpose.msra.mxu0 0
        %924 = vmatprep.subr.bf16.mxu0 0
        %925 = vmatpush1.bf16.xpose.msra.mxu0 0
        %926 = vmatprep.subr.bf16.mxu0 0
        %927 = vmatpush1.bf16.xpose.msra.mxu0 0
        %928 = vmatprep.subr.bf16.mxu0 0
        %929 = vmatpush1.bf16.xpose.msra.mxu0 0
        %930 = vmatprep.subr.bf16.mxu0 0
        %931 = vmatpush1.bf16.xpose.msra.mxu0 0
        %932 = vmatprep.subr.bf16.mxu0 0
        %933 = vmatpush1.bf16.xpose.msra.mxu0 0
        %934 = vmatprep.subr.bf16.mxu0 0
        %935 = vmatpush1.bf16.xpose.msra.mxu0 0
        %936 = vmatprep.subr.bf16.mxu0 0
        %937 = vmatpush1.bf16.xpose.msra.mxu0 0
        %938 = vmatprep.subr.bf16.mxu0 0
        %939 = vmatpush1.bf16.xpose.msra.mxu0 0
        %940 = vmatprep.subr.bf16.mxu0 0
        %941 = vmatpush1.bf16.xpose.msra.mxu0 0
        %942 = vmatprep.subr.bf16.mxu0 0
        %943 = vmatpush1.bf16.xpose.msra.mxu0 0
        %944 = vmatprep.subr.bf16.mxu0 0
        %945 = vmatpush1.bf16.xpose.msra.mxu0 0
        %946 = vmatprep.mubr.bf16.mxu0 0
        %947 = vmatmul.mubr.bf16.gmra.mrb[0].mxu0 %v909
        %v948 = vpop.f32.mrb[0].mxu0
        %v949 = vadd.f32 0.0, %v948
        %v950 = vpop.f32.mrb[0].mxu0
        %v951 = vpop.f32.mrb[0].mxu0
        %v952 = vpop.f32.mrb[0].mxu0
        %953 = vdwg.mxu0
        %v955 = vsel %vm861, %v517, 0
        %v958 = vsel %vm861, %v687, 0
        %960 = vmatprep.subr.bf16.mxu0 0
        %961 = vmatpush1.bf16.xpose.msra.mxu0 %v958
        %962 = vmatprep.subr.bf16.mxu0 0
        %963 = vmatpush1.bf16.xpose.msra.mxu0 0
        %964 = vmatprep.subr.bf16.mxu0 0
        %965 = vmatpush1.bf16.xpose.msra.mxu0 0
        %966 = vmatprep.subr.bf16.mxu0 0
        %967 = vmatpush1.bf16.xpose.msra.mxu0 0
        %968 = vmatprep.subr.bf16.mxu0 0
        %969 = vmatpush1.bf16.xpose.msra.mxu0 0
        %970 = vmatprep.subr.bf16.mxu0 0
        %971 = vmatpush1.bf16.xpose.msra.mxu0 0
        %972 = vmatprep.subr.bf16.mxu0 0
        %973 = vmatpush1.bf16.xpose.msra.mxu0 0
        %974 = vmatprep.subr.bf16.mxu0 0
        %975 = vmatpush1.bf16.xpose.msra.mxu0 0
        %976 = vmatprep.subr.bf16.mxu0 0
        %977 = vmatpush1.bf16.xpose.msra.mxu0 0
        %978 = vmatprep.subr.bf16.mxu0 0
        %979 = vmatpush1.bf16.xpose.msra.mxu0 0
        %980 = vmatprep.subr.bf16.mxu0 0
        %981 = vmatpush1.bf16.xpose.msra.mxu0 0
        %982 = vmatprep.subr.bf16.mxu0 0
        %983 = vmatpush1.bf16.xpose.msra.mxu0 0
        %984 = vmatprep.subr.bf16.mxu0 0
        %985 = vmatpush1.bf16.xpose.msra.mxu0 0
        %986 = vmatprep.subr.bf16.mxu0 0
        %987 = vmatpush1.bf16.xpose.msra.mxu0 0
        %988 = vmatprep.subr.bf16.mxu0 0
        %989 = vmatpush1.bf16.xpose.msra.mxu0 0
        %990 = vmatprep.subr.bf16.mxu0 0
        %991 = vmatpush1.bf16.xpose.msra.mxu0 0
        %992 = vmatprep.mubr.bf16.mxu0 0
        %993 = vmatmul.mubr.bf16.gmra.mrb[0].mxu0 %v955
        %v994 = vpop.f32.mrb[0].mxu0
        %v995 = vadd.f32 0.0, %v994
        %v996 = vpop.f32.mrb[0].mxu0
        %v997 = vpop.f32.mrb[0].mxu0
        %v998 = vpop.f32.mrb[0].mxu0
        %999 = vdwg.mxu0
        %v1001 = vsel %vm861, %v520, 0
        %v1004 = vsel %vm861, %v690, 0
        %1006 = vmatprep.subr.bf16.mxu0 0
        %1007 = vmatpush1.bf16.xpose.msra.mxu0 %v1004
        %1008 = vmatprep.subr.bf16.mxu0 0
        %1009 = vmatpush1.bf16.xpose.msra.mxu0 0
        %1010 = vmatprep.subr.bf16.mxu0 0
        %1011 = vmatpush1.bf16.xpose.msra.mxu0 0
        %1012 = vmatprep.subr.bf16.mxu0 0
        %1013 = vmatpush1.bf16.xpose.msra.mxu0 0
        %1014 = vmatprep.subr.bf16.mxu0 0
        %1015 = vmatpush1.bf16.xpose.msra.mxu0 0
        %1016 = vmatprep.subr.bf16.mxu0 0
        %1017 = vmatpush1.bf16.xpose.msra.mxu0 0
        %1018 = vmatprep.subr.bf16.mxu0 0
        %1019 = vmatpush1.bf16.xpose.msra.mxu0 0
        %1020 = vmatprep.subr.bf16.mxu0 0
        %1021 = vmatpush1.bf16.xpose.msra.mxu0 0
        %1022 = vmatprep.subr.bf16.mxu0 0
        %1023 = vmatpush1.bf16.xpose.msra.mxu0 0
        %1024 = vmatprep.subr.bf16.mxu0 0
        %1025 = vmatpush1.bf16.xpose.msra.mxu0 0
        %1026 = vmatprep.subr.bf16.mxu0 0
        %1027 = vmatpush1.bf16.xpose.msra.mxu0 0
        %1028 = vmatprep.subr.bf16.mxu0 0
        %1029 = vmatpush1.bf16.xpose.msra.mxu0 0
        %1030 = vmatprep.subr.bf16.mxu0 0
        %1031 = vmatpush1.bf16.xpose.msra.mxu0 0
        %1032 = vmatprep.subr.bf16.mxu0 0
        %1033 = vmatpush1.bf16.xpose.msra.mxu0 0
        %1034 = vmatprep.subr.bf16.mxu0 0
        %1035 = vmatpush1.bf16.xpose.msra.mxu0 0
        %1036 = vmatprep.subr.bf16.mxu0 0
        %1037 = vmatpush1.bf16.xpose.msra.mxu0 0
        %1038 = vmatprep.mubr.bf16.mxu0 0
        %1039 = vmatmul.mubr.bf16.gmra.mrb[0].mxu0 %v1001
        %v1040 = vpop.f32.mrb[0].mxu0
        %v1041 = vadd.f32 0.0, %v1040
        %v1042 = vpop.f32.mrb[0].mxu0
        %v1043 = vpop.f32.mrb[0].mxu0
        %v1044 = vpop.f32.mrb[0].mxu0
        %1045 = vdwg.mxu0
        %v1046 = vsel %vm861, %v903, -inf
        %1047 = vmax.xlane.f32.xlu0 %v1046
        %v1048 = vpop.xlane.xlu0 %1047
        %v1049 = vsel %vm861, %v949, -inf
        %1050 = vmax.xlane.f32.xlu0 %v1049
        %v1051 = vpop.xlane.xlu0 %1050
        %v1052 = vsel %vm861, %v995, -inf
        %1053 = vmax.xlane.f32.xlu0 %v1052
        %v1054 = vpop.xlane.xlu0 %1053
        %v1055 = vsel %vm861, %v1041, -inf
        %1056 = vmax.xlane.f32.xlu0 %v1055
        %v1057 = vpop.xlane.xlu0 %1056
        %v1058 = vsub.f32 %v903, %v1048
        %v1059 = vsub.f32 %v949, %v1051
        %v1060 = vsub.f32 %v995, %v1054
        %v1061 = vsub.f32 %v1041, %v1057
        %v1062 = vmul.f32 %v1058, 1.442695
        %v1063 = vpow.pop %v1062
        %v1064 = vmul.f32 %v1059, 1.442695
        %v1065 = vpow.pop %v1064
        %v1066 = vmul.f32 %v1060, 1.442695
        %v1067 = vpow.pop %v1066
        %v1068 = vmul.f32 %v1061, 1.442695
        %v1069 = vpow.pop %v1068
        %v1070 = vsel %vm861, %v1063, 0.0
        %1071 = vadd.xlane.f32.xlu0 %v1070
        %v1072 = vpop.xlane.xlu0 %1071
        %v1073 = vsel %vm861, %v1065, 0.0
        %1074 = vadd.xlane.f32.xlu0 %v1073
        %v1075 = vpop.xlane.xlu0 %1074
        %v1076 = vsel %vm861, %v1067, 0.0
        %1077 = vadd.xlane.f32.xlu0 %v1076
        %v1078 = vpop.xlane.xlu0 %1077
        %v1079 = vsel %vm861, %v1069, 0.0
        %1080 = vadd.xlane.f32.xlu0 %v1079
        %v1081 = vpop.xlane.xlu0 %1080
        %v1082 = vrcp.pop %v1072
        %v1083 = vrcp.pop %v1075
        %v1084 = vrcp.pop %v1078
        %v1085 = vrcp.pop %v1081
        %v1086 = vmul.f32 %v1063, %v1082
        %v1087 = vmul.f32 %v1065, %v1083
        %v1088 = vmul.f32 %v1067, %v1084
        %v1089 = vmul.f32 %v1069, %v1085
        %v1090 = vpack.c.bf16 %v1086, %v1086
        %v1091 = vpack.c.bf16 %v1087, %v1087
        %v1092 = vpack.c.bf16 %v1088, %v1088
        %v1093 = vpack.c.bf16 %v1089, %v1089
        %v1095 = vsel %vm861, %v1090, 0
        %vm1097 = vcmask 1043456
        %v1099 = vsel %vm1097, %v851, 0
        %1101 = vmatprep.subr.bf16.mxu0 0
        %1102 = vmatpush1.bf16.msra.mxu0 %v1099
        %1103 = vmatprep.subr.bf16.mxu0 0
        %1104 = vmatpush1.bf16.msra.mxu0 0
        %1105 = vmatprep.subr.bf16.mxu0 0
        %1106 = vmatpush1.bf16.msra.mxu0 0
        %1107 = vmatprep.subr.bf16.mxu0 0
        %1108 = vmatpush1.bf16.msra.mxu0 0
        %1109 = vmatprep.subr.bf16.mxu0 0
        %1110 = vmatpush1.bf16.msra.mxu0 0
        %1111 = vmatprep.subr.bf16.mxu0 0
        %1112 = vmatpush1.bf16.msra.mxu0 0
        %1113 = vmatprep.subr.bf16.mxu0 0
        %1114 = vmatpush1.bf16.msra.mxu0 0
        %1115 = vmatprep.subr.bf16.mxu0 0
        %1116 = vmatpush1.bf16.msra.mxu0 0
        %1117 = vmatprep.subr.bf16.mxu0 0
        %1118 = vmatpush1.bf16.msra.mxu0 0
        %1119 = vmatprep.subr.bf16.mxu0 0
        %1120 = vmatpush1.bf16.msra.mxu0 0
        %1121 = vmatprep.subr.bf16.mxu0 0
        %1122 = vmatpush1.bf16.msra.mxu0 0
        %1123 = vmatprep.subr.bf16.mxu0 0
        %1124 = vmatpush1.bf16.msra.mxu0 0
        %1125 = vmatprep.subr.bf16.mxu0 0
        %1126 = vmatpush1.bf16.msra.mxu0 0
        %1127 = vmatprep.subr.bf16.mxu0 0
        %1128 = vmatpush1.bf16.msra.mxu0 0
        %1129 = vmatprep.subr.bf16.mxu0 0
        %1130 = vmatpush1.bf16.msra.mxu0 0
        %1131 = vmatprep.subr.bf16.mxu0 0
        %1132 = vmatpush1.bf16.msra.mxu0 0
        %1133 = vmatprep.mubr.bf16.mxu0 0
        %1134 = vmatmul.mubr.bf16.gmra.mrb[0].mxu0 %v1095
        %v1135 = vpop.f32.mrb[0].mxu0
        %v1136 = vadd.f32 0.0, %v1135
        %v1137 = vpop.f32.mrb[0].mxu0
        %v1138 = vpop.f32.mrb[0].mxu0
        %v1139 = vpop.f32.mrb[0].mxu0
        %1140 = vdwg.mxu0
        %v1142 = vsel %vm861, %v1091, 0
        %v1145 = vsel %vm1097, %v854, 0
        %1147 = vmatprep.subr.bf16.mxu0 0
        %1148 = vmatpush1.bf16.msra.mxu0 %v1145
        %1149 = vmatprep.subr.bf16.mxu0 0
        %1150 = vmatpush1.bf16.msra.mxu0 0
        %1151 = vmatprep.subr.bf16.mxu0 0
        %1152 = vmatpush1.bf16.msra.mxu0 0
        %1153 = vmatprep.subr.bf16.mxu0 0
        %1154 = vmatpush1.bf16.msra.mxu0 0
        %1155 = vmatprep.subr.bf16.mxu0 0
        %1156 = vmatpush1.bf16.msra.mxu0 0
        %1157 = vmatprep.subr.bf16.mxu0 0
        %1158 = vmatpush1.bf16.msra.mxu0 0
        %1159 = vmatprep.subr.bf16.mxu0 0
        %1160 = vmatpush1.bf16.msra.mxu0 0
        %1161 = vmatprep.subr.bf16.mxu0 0
        %1162 = vmatpush1.bf16.msra.mxu0 0
        %1163 = vmatprep.subr.bf16.mxu0 0
        %1164 = vmatpush1.bf16.msra.mxu0 0
        %1165 = vmatprep.subr.bf16.mxu0 0
        %1166 = vmatpush1.bf16.msra.mxu0 0
        %1167 = vmatprep.subr.bf16.mxu0 0
        %1168 = vmatpush1.bf16.msra.mxu0 0
        %1169 = vmatprep.subr.bf16.mxu0 0
        %1170 = vmatpush1.bf16.msra.mxu0 0
        %1171 = vmatprep.subr.bf16.mxu0 0
        %1172 = vmatpush1.bf16.msra.mxu0 0
        %1173 = vmatprep.subr.bf16.mxu0 0
        %1174 = vmatpush1.bf16.msra.mxu0 0
        %1175 = vmatprep.subr.bf16.mxu0 0
        %1176 = vmatpush1.bf16.msra.mxu0 0
        %1177 = vmatprep.subr.bf16.mxu0 0
        %1178 = vmatpush1.bf16.msra.mxu0 0
        %1179 = vmatprep.mubr.bf16.mxu0 0
        %1180 = vmatmul.mubr.bf16.gmra.mrb[0].mxu0 %v1142
        %v1181 = vpop.f32.mrb[0].mxu0
        %v1182 = vadd.f32 0.0, %v1181
        %v1183 = vpop.f32.mrb[0].mxu0
        %v1184 = vpop.f32.mrb[0].mxu0
        %v1185 = vpop.f32.mrb[0].mxu0
        %1186 = vdwg.mxu0
        %v1188 = vsel %vm861, %v1092, 0
        %v1191 = vsel %vm1097, %v857, 0
        %1193 = vmatprep.subr.bf16.mxu0 0
        %1194 = vmatpush1.bf16.msra.mxu0 %v1191
        %1195 = vmatprep.subr.bf16.mxu0 0
        %1196 = vmatpush1.bf16.msra.mxu0 0
        %1197 = vmatprep.subr.bf16.mxu0 0
        %1198 = vmatpush1.bf16.msra.mxu0 0
        %1199 = vmatprep.subr.bf16.mxu0 0
        %1200 = vmatpush1.bf16.msra.mxu0 0
        %1201 = vmatprep.subr.bf16.mxu0 0
        %1202 = vmatpush1.bf16.msra.mxu0 0
        %1203 = vmatprep.subr.bf16.mxu0 0
        %1204 = vmatpush1.bf16.msra.mxu0 0
        %1205 = vmatprep.subr.bf16.mxu0 0
        %1206 = vmatpush1.bf16.msra.mxu0 0
        %1207 = vmatprep.subr.bf16.mxu0 0
        %1208 = vmatpush1.bf16.msra.mxu0 0
        %1209 = vmatprep.subr.bf16.mxu0 0
        %1210 = vmatpush1.bf16.msra.mxu0 0
        %1211 = vmatprep.subr.bf16.mxu0 0
        %1212 = vmatpush1.bf16.msra.mxu0 0
        %1213 = vmatprep.subr.bf16.mxu0 0
        %1214 = vmatpush1.bf16.msra.mxu0 0
        %1215 = vmatprep.subr.bf16.mxu0 0
        %1216 = vmatpush1.bf16.msra.mxu0 0
        %1217 = vmatprep.subr.bf16.mxu0 0
        %1218 = vmatpush1.bf16.msra.mxu0 0
        %1219 = vmatprep.subr.bf16.mxu0 0
        %1220 = vmatpush1.bf16.msra.mxu0 0
        %1221 = vmatprep.subr.bf16.mxu0 0
        %1222 = vmatpush1.bf16.msra.mxu0 0
        %1223 = vmatprep.subr.bf16.mxu0 0
        %1224 = vmatpush1.bf16.msra.mxu0 0
        %1225 = vmatprep.mubr.bf16.mxu0 0
        %1226 = vmatmul.mubr.bf16.gmra.mrb[0].mxu0 %v1188
        %v1227 = vpop.f32.mrb[0].mxu0
        %v1228 = vadd.f32 0.0, %v1227
        %v1229 = vpop.f32.mrb[0].mxu0
        %v1230 = vpop.f32.mrb[0].mxu0
        %v1231 = vpop.f32.mrb[0].mxu0
        %1232 = vdwg.mxu0
        %v1234 = vsel %vm861, %v1093, 0
        %v1237 = vsel %vm1097, %v860, 0
        %1239 = vmatprep.subr.bf16.mxu0 0
        %1240 = vmatpush1.bf16.msra.mxu0 %v1237
        %1241 = vmatprep.subr.bf16.mxu0 0
        %1242 = vmatpush1.bf16.msra.mxu0 0
        %1243 = vmatprep.subr.bf16.mxu0 0
        %1244 = vmatpush1.bf16.msra.mxu0 0
        %1245 = vmatprep.subr.bf16.mxu0 0
        %1246 = vmatpush1.bf16.msra.mxu0 0
        %1247 = vmatprep.subr.bf16.mxu0 0
        %1248 = vmatpush1.bf16.msra.mxu0 0
        %1249 = vmatprep.subr.bf16.mxu0 0
        %1250 = vmatpush1.bf16.msra.mxu0 0
        %1251 = vmatprep.subr.bf16.mxu0 0
        %1252 = vmatpush1.bf16.msra.mxu0 0
        %1253 = vmatprep.subr.bf16.mxu0 0
        %1254 = vmatpush1.bf16.msra.mxu0 0
        %1255 = vmatprep.subr.bf16.mxu0 0
        %1256 = vmatpush1.bf16.msra.mxu0 0
        %1257 = vmatprep.subr.bf16.mxu0 0
        %1258 = vmatpush1.bf16.msra.mxu0 0
        %1259 = vmatprep.subr.bf16.mxu0 0
        %1260 = vmatpush1.bf16.msra.mxu0 0
        %1261 = vmatprep.subr.bf16.mxu0 0
        %1262 = vmatpush1.bf16.msra.mxu0 0
        %1263 = vmatprep.subr.bf16.mxu0 0
        %1264 = vmatpush1.bf16.msra.mxu0 0
        %1265 = vmatprep.subr.bf16.mxu0 0
        %1266 = vmatpush1.bf16.msra.mxu0 0
        %1267 = vmatprep.subr.bf16.mxu0 0
        %1268 = vmatpush1.bf16.msra.mxu0 0
        %1269 = vmatprep.subr.bf16.mxu0 0
        %1270 = vmatpush1.bf16.msra.mxu0 0
        %1271 = vmatprep.mubr.bf16.mxu0 0
        %1272 = vmatmul.mubr.bf16.gmra.mrb[0].mxu0 %v1234
        %v1273 = vpop.f32.mrb[0].mxu0
        %v1274 = vadd.f32 0.0, %v1273
        %v1275 = vpop.f32.mrb[0].mxu0
        %v1276 = vpop.f32.mrb[0].mxu0
        %v1277 = vpop.f32.mrb[0].mxu0
        %1278 = vdwg.mxu0
        %v1279 = vcombine.low %v1136, %v1228
        %v1280 = vcombine.high %v1136, %v1228
        %v1282 = vunpack.c.l.s4 1983009808
        %v1283 = vunpack.c.0.s8 %v1282
        %v1284 = vlaneseq
        %v1285 = vshrl.u32 %v1284, 7
        %v1286 = vsub.s32 %v1283, %v1285
        %v1287 = vrot.slane %v1279, %v1286
        %v1289 = vunpack.c.l.s4 1983009808
        %v1290 = vunpack.c.0.s8 %v1289
        %v1291 = vlaneseq
        %v1292 = vshrl.u32 %v1291, 7
        %v1293 = vsub.s32 %v1290, %v1292
        %v1294 = vrot.slane %v1280, %v1293
        %v1295 = vcombine.low %v1182, %v1274
        %v1296 = vcombine.high %v1182, %v1274
        %v1298 = vunpack.c.l.s4 1983009808
        %v1299 = vunpack.c.0.s8 %v1298
        %v1300 = vlaneseq
        %v1301 = vshrl.u32 %v1300, 7
        %v1302 = vsub.s32 %v1299, %v1301
        %v1303 = vrot.slane %v1295, %v1302
        %v1305 = vunpack.c.l.s4 1983009808
        %v1306 = vunpack.c.0.s8 %v1305
        %v1307 = vlaneseq
        %v1308 = vshrl.u32 %v1307, 7
        %v1309 = vsub.s32 %v1306, %v1308
        %v1310 = vrot.slane %v1296, %v1309
        %v1311 = vcombine.low %v1287, %v1303
        %v1312 = vcombine.high %v1287, %v1303
        %v1314 = vunpack.c.l.s4 1934713408
        %v1315 = vunpack.c.0.s8 %v1314
        %v1316 = vlaneseq
        %v1317 = vshrl.u32 %v1316, 7
        %v1318 = vsub.s32 %v1315, %v1317
        %v1319 = vrot.slane %v1311, %v1318
        %v1321 = vunpack.c.l.s4 1934713408
        %v1322 = vunpack.c.0.s8 %v1321
        %v1323 = vlaneseq
        %v1324 = vshrl.u32 %v1323, 7
        %v1325 = vsub.s32 %v1322, %v1324
        %v1326 = vrot.slane %v1312, %v1325
        %v1327 = vcombine.low %v1294, %v1310
        %v1328 = vcombine.high %v1294, %v1310
        %v1330 = vunpack.c.l.s4 1934713408
        %v1331 = vunpack.c.0.s8 %v1330
        %v1332 = vlaneseq
        %v1333 = vshrl.u32 %v1332, 7
        %v1334 = vsub.s32 %v1331, %v1333
        %v1335 = vrot.slane %v1327, %v1334
        %v1337 = vunpack.c.l.s4 1934713408
        %v1338 = vunpack.c.0.s8 %v1337
        %v1339 = vlaneseq
        %v1340 = vshrl.u32 %v1339, 7
        %v1341 = vsub.s32 %v1338, %v1340
        %v1342 = vrot.slane %v1328, %v1341
        %v1343 = vcombine.high %v1319, 0.0
        %v1344 = vcombine.high %v1326, 0.0
        %v1345 = vcombine.high %v1335, 0.0
        %v1346 = vcombine.high %v1342, 0.0
        %v1347 = vcombine.low %v1319, %v1326
        %v1349 = vunpack.c.l.s4 1983009808
        %v1350 = vunpack.c.0.s8 %v1349
        %v1351 = vlaneseq
        %v1352 = vshrl.u32 %v1351, 7
        %v1353 = vsub.s32 %v1350, %v1352
        %v1354 = vrot.slane %v1347, %v1353
        %v1355 = vcombine.low %v1343, %v1344
        %v1357 = vunpack.c.l.s4 1983009808
        %v1358 = vunpack.c.0.s8 %v1357
        %v1359 = vlaneseq
        %v1360 = vshrl.u32 %v1359, 7
        %v1361 = vsub.s32 %v1358, %v1360
        %v1362 = vrot.slane %v1355, %v1361
        %v1363 = vcombine.low %v1335, %v1342
        %v1365 = vunpack.c.l.s4 1983009808
        %v1366 = vunpack.c.0.s8 %v1365
        %v1367 = vlaneseq
        %v1368 = vshrl.u32 %v1367, 7
        %v1369 = vsub.s32 %v1366, %v1368
        %v1370 = vrot.slane %v1363, %v1369
        %v1371 = vcombine.low %v1345, %v1346
        %v1373 = vunpack.c.l.s4 1983009808
        %v1374 = vunpack.c.0.s8 %v1373
        %v1375 = vlaneseq
        %v1376 = vshrl.u32 %v1375, 7
        %v1377 = vsub.s32 %v1374, %v1376
        %v1378 = vrot.slane %v1371, %v1377
        %v1379 = vcombine.low %v1354, %v1362
        %v1380 = vcombine.high %v1354, %v1362
        %v1382 = vunpack.c.l.s4 1934713408
        %v1383 = vunpack.c.0.s8 %v1382
        %v1384 = vlaneseq
        %v1385 = vshrl.u32 %v1384, 7
        %v1386 = vsub.s32 %v1383, %v1385
        %v1387 = vrot.slane %v1379, %v1386
        %v1389 = vunpack.c.l.s4 1934713408
        %v1390 = vunpack.c.0.s8 %v1389
        %v1391 = vlaneseq
        %v1392 = vshrl.u32 %v1391, 7
        %v1393 = vsub.s32 %v1390, %v1392
        %v1394 = vrot.slane %v1380, %v1393
        %v1395 = vcombine.low %v1370, %v1378
        %v1396 = vcombine.high %v1370, %v1378
        %v1398 = vunpack.c.l.s4 1934713408
        %v1399 = vunpack.c.0.s8 %v1398
        %v1400 = vlaneseq
        %v1401 = vshrl.u32 %v1400, 7
        %v1402 = vsub.s32 %v1399, %v1401
        %v1403 = vrot.slane %v1395, %v1402
        %v1405 = vunpack.c.l.s4 1934713408
        %v1406 = vunpack.c.0.s8 %v1405
        %v1407 = vlaneseq
        %v1408 = vshrl.u32 %v1407, 7
        %v1409 = vsub.s32 %v1406, %v1408
        %v1410 = vrot.slane %v1396, %v1409
        %v1411 = vcombine.low %v1387, %v1403
        %v1412 = vcombine.high %v1387, %v1403
        %v1413 = vcombine.low %v1394, %v1410
        %v1414 = vcombine.high %v1394, %v1410
        %1416 = vrot.lane.b32.xlu0 %v1412, 8
        %v1417 = vpop.permute.xlu0 %1416
        %1420 = vrot.lane.b32.xlu0 %v1413, 16
        %v1421 = vpop.permute.xlu0 %1420
        %1424 = vrot.lane.b32.xlu0 %v1414, 24
        %v1425 = vpop.permute.xlu0 %1424
        %v1427 = vsel %vm861, %v1411, %v1417
        %vm1428 = vcmask 130048
        %v1429 = vsel %vm1428, %v1427, %v1421
        %vm1430 = vcmask 195584
        %v1431 = vsel %vm1430, %v1429, %v1425
        %1432 = vst.msk [vmem:[%s258] sm:$0xff] %vm299, %v1431
        %s1433 = sand.u32 %s103, 1
        %s1434 = scalar_lea.sflag [#allocation4], %s1433
        %s1435 = sand.u32 %s103, 1
        %s1436 = smul.addr %s1435, 8
        %s1437 = scalar_lea.vmem [#allocation7], %s1436
        %s1438 = sand.u32 %s27, 1
        %s1439 = scalar_lea.sflag [#allocation9], %s1438
        %s1440 = sand.u32 %s129, 1
        %s1441 = smul.addr %s1440, 8
        %s1442 = scalar_lea.vmem [#allocation8], %s1441
        %s1443 = sand.u32 %s27, 1
        %s1444 = scalar_lea.sflag [#allocation9], %s1443
        %s1445 = sand.u32 %s155, 1
        %s1446 = smul.addr %s1445, 8
        %s1447 = scalar_lea.vmem [#allocation10], %s1446
        // Predicated region
        $region41: #{tpu_custom_call.1} parent=31 // pred_check
          %p1448 = pneg %p113
        $region42: #{tpu_custom_call.1} parent=31 // pred_check_branch
          %1450 = sbr.rel (%p1448) target = $region44
        $region43: #{tpu_custom_call.1} parent=31 // pred_region
          %s1452 = ssub.s32 128, 128
          %1453 = vsyncadd %s1434, %s1452
          %s1454 = smul.addr %s27, 128
          %s1455 = scalar_lea.hbm %s3, %s1454
          %s1457 = sshll.u32 %s1437, 4
          %s1458 = int_to_ptr.vmem [resolvable:$true] %s1457
          %1460 = dma.vmem_to_hbm [thread:$0]  %s1458, 128, %s1455, %s1434
        $region44: #{tpu_custom_call.1} parent=31 // pred_fallthru
          _
        // Predicated region
        $region45: #{tpu_custom_call.1} parent=31 // pred_check
          %p1461 = pneg %p139
        $region46: #{tpu_custom_call.1} parent=31 // pred_check_branch
          %1463 = sbr.rel (%p1461) target = $region48
        $region47: #{tpu_custom_call.1} parent=31 // pred_region
          %s1465 = ssub.s32 128, 128
          %1466 = vsyncadd %s1439, %s1465
          %s1467 = smul.addr %s27, 128
          %s1468 = scalar_lea.hbm %s4, %s1467
          %s1470 = sshll.u32 %s1442, 4
          %s1471 = int_to_ptr.vmem [resolvable:$true] %s1470
          %1473 = dma.vmem_to_hbm [thread:$0]  %s1471, 128, %s1468, %s1439
        $region48: #{tpu_custom_call.1} parent=31 // pred_fallthru
          _
        // Predicated region
        $region49: #{tpu_custom_call.1} parent=31 // pred_check
          %p1474 = pneg %p165
        $region50: #{tpu_custom_call.1} parent=31 // pred_check_branch
          %1476 = sbr.rel (%p1474) target = $region52
        $region51: #{tpu_custom_call.1} parent=31 // pred_region
          %s1478 = ssub.s32 128, 128
          %1479 = vsyncadd %s1444, %s1478
          %s1480 = smul.addr %s27, 128
          %s1481 = scalar_lea.hbm %s5, %s1480
          %s1483 = sshll.u32 %s1447, 4
          %s1484 = int_to_ptr.vmem [resolvable:$true] %s1483
          %1486 = dma.vmem_to_hbm [thread:$0]  %s1484, 128, %s1481, %s1444
        $region52: #{tpu_custom_call.1} parent=31 // pred_fallthru
          _
      $region32: #{tpu_custom_call.1} parent=5 // pred_fallthru
        _
      %p1487 = scmp.le.s32.totalorder 2, %s22
      // Predicated region
      $region53: #{tpu_custom_call.1} parent=5 // pred_check
        %p1488 = pneg %p1487
      $region54: #{tpu_custom_call.1} parent=5 // pred_check_branch
        %1490 = sbr.rel (%p1488) target = $region56
      $region55: #{tpu_custom_call.1} parent=5 // pred_region
        %s1491 = ssub.s32 %s22, 2
        // Predicated region
        $region57: #{tpu_custom_call.1} parent=55 // pred_check
          %p1492 = pneg %p119
        $region58: #{tpu_custom_call.1} parent=55 // pred_check_branch
          %1494 = sbr.rel (%p1492) target = $region60
        $region59: #{tpu_custom_call.1} parent=55 // pred_region
          %s1495 = sand.u32 %s104, 1
          %s1496 = scalar_lea.sflag [#allocation4], %s1495
          %s1497 = sand.u32 %s104, 1
          %s1498 = smul.addr %s1497, 8
          %s1499 = scalar_lea.vmem [#allocation7], %s1498
          %1500 = dma.done %s1496, 128
        $region60: #{tpu_custom_call.1} parent=55 // pred_fallthru
          _
        // Predicated region
        $region61: #{tpu_custom_call.1} parent=55 // pred_check
          %p1501 = pneg %p145
        $region62: #{tpu_custom_call.1} parent=55 // pred_check_branch
          %1503 = sbr.rel (%p1501) target = $region64
        $region63: #{tpu_custom_call.1} parent=55 // pred_region
          %s1504 = sand.u32 %s28, 1
          %s1505 = scalar_lea.sflag [#allocation9], %s1504
          %s1506 = sand.u32 %s130, 1
          %s1507 = smul.addr %s1506, 8
          %s1508 = scalar_lea.vmem [#allocation8], %s1507
          %1509 = dma.done %s1505, 128
        $region64: #{tpu_custom_call.1} parent=55 // pred_fallthru
          _
        // Predicated region
        $region65: #{tpu_custom_call.1} parent=55 // pred_check
          %p1510 = pneg %p171
        $region66: #{tpu_custom_call.1} parent=55 // pred_check_branch
          %1512 = sbr.rel (%p1510) target = $region68
        $region67: #{tpu_custom_call.1} parent=55 // pred_region
          %s1513 = sand.u32 %s28, 1
          %s1514 = scalar_lea.sflag [#allocation9], %s1513
          %s1515 = sand.u32 %s156, 1
          %s1516 = smul.addr %s1515, 8
          %s1517 = scalar_lea.vmem [#allocation10], %s1516
          %1518 = dma.done %s1514, 128
        $region68: #{tpu_custom_call.1} parent=55 // pred_fallthru
          _
      $region56: #{tpu_custom_call.1} parent=5 // pred_fallthru
        _
    $region6: #{tpu_custom_call.1} parent=1 // loop_footer
      %s26 = sadd.s32 1, %s22
    $region7: #{tpu_custom_call.1} parent=1 // loop_footer_branch
      %21 = sbr.rel target = $region3
    $region8: #{tpu_custom_call.1} parent=1 // loop_exit
      _
    %1519 = vsyncpa [#allocation3], 1
    %s1520 = scalar_lea.sflag [#allocation3], 1
    %1521 = vsyncpa %s1520, 1
    %1522 = vsyncpa [#allocation6], 1
    %1523 = vsyncpa [#allocation4], 1
    %s1524 = scalar_lea.sflag [#allocation4], 1
    %1525 = vsyncpa %s1524, 1
    %1526 = vsyncpa [#allocation9], 1
    %s1527 = scalar_lea.sflag [#allocation9], 1
    %1528 = vsyncpa %s1527, 1

</llo_original>
